<compile_context>
chip_gen: v5e
topology: v5e:2x2
jax: 0.10.0
libtpu: 0.0.40
codegen_flags: <defaults>
</compile_context>

<pallas_src>
import functools

import jax
import jax.numpy as jnp
from jax.experimental import pallas as pl
from jax.experimental.pallas import tpu as pltpu


def _round_up(n, m):
    return ((n + m - 1) // m) * m


def _qnet_kernel(board_ref,                      # (bb, RCp) int32, VMEM
                 w1a_ref, w1b_ref, w1c_ref,      # (RCp, ngf) bf16, resident
                 b1_ref,                         # (1, ngf)  f32,  resident
                 w2_ref, b2_ref,                 # (ngf,ngf) bf16 / (1,ngf) f32
                 w3_ref, b3_ref,                 # (ngf,128) bf16 / (1,128) f32
                 alpha_ref,                      # (2,) f32 in SMEM
                 out_ref):                       # (bb, 128) f32
    board = board_ref[...]                                        # (bb, RCp) int32

    # Fused channel-major one-hot: class-c indicator is matmul'd against the
    # corresponding row-slice of W1.  Pure VPU compares; padded cells hold the
    # sentinel value 3 so they match no class (and those W1 rows are zero).
    f0 = (board == 0).astype(jnp.float32).astype(jnp.bfloat16)
    f1 = (board == 1).astype(jnp.float32).astype(jnp.bfloat16)
    f2 = (board == 2).astype(jnp.float32).astype(jnp.bfloat16)

    # Linear(126, ngf)  ==  f0 @ W1[0:42] + f1 @ W1[42:84] + f2 @ W1[84:126]
    h = jnp.dot(f0, w1a_ref[...], preferred_element_type=jnp.float32)
    h = h + jnp.dot(f1, w1b_ref[...], preferred_element_type=jnp.float32)
    h = h + jnp.dot(f2, w1c_ref[...], preferred_element_type=jnp.float32)
    h = h + b1_ref[...]

    a1 = alpha_ref[0]                       # SMEM scalar
    h = jnp.where(h > 0, h, a1 * h)         # PReLU #1 (f32)

    # Linear(ngf, ngf) + PReLU
    h = jnp.dot(h.astype(jnp.bfloat16), w2_ref[...],
                preferred_element_type=jnp.float32) + b2_ref[...]
    a2 = alpha_ref[1]
    h = jnp.where(h > 0, h, a2 * h)         # PReLU #2 (f32)

    # Linear(ngf, actions) — padded to 128 output lanes for an unmasked store.
    out = jnp.dot(h.astype(jnp.bfloat16), w3_ref[...],
                  preferred_element_type=jnp.float32) + b3_ref[...]
    out_ref[...] = out                      # (bb, 128) lane-dense f32 store


def q_network_forward(x, params, *, actions=7, block_b=512):
    """x: (B, 1, R, C) int with values in {0,1,2}. Returns (B, actions) f32."""
    w1_0, w1_1, w1_2, b1, w2, b2, w3p, b3p, alphas = params

    B = x.shape[0]
    R, C = x.shape[2], x.shape[3]
    rc = R * C
    rc_pad = w1_0.shape[0]        # 48  (42 rounded up to a multiple of 16)
    ngf = w2.shape[0]
    out_pad = w3p.shape[1]        # 128 (lane-dense padded action dim)

    # Raw board, flattened row-major — this (tiny, int32) array is the only
    # per-sample data DMA'd into the kernel.
    board = x.reshape(B, rc).astype(jnp.int32)

    # Batch block: multiple of 8 sublanes, capped; pad B up to a whole grid.
    bb = min(block_b, _round_up(B, 8))
    Bp = _round_up(B, bb)
    # Pad cell dim to rc_pad (sentinel 3 -> matches no class) and batch to Bp.
    board = jnp.pad(board, ((0, Bp - B), (0, rc_pad - rc)), constant_values=3)

    grid = (Bp // bb,)

    flops = 2 * Bp * (3 * rc_pad * ngf + ngf * ngf + ngf * out_pad)
    bytes_accessed = (
        Bp * rc_pad * 4                                        # board (int32)
        + (3 * rc_pad * ngf + ngf * ngf + ngf * out_pad) * 2   # bf16 weights
        + (2 * ngf + out_pad) * 4 + 2 * 4                      # biases + alphas
        + Bp * out_pad * 4                                     # output
    )

    resident = lambda i: (0, 0)   # weights/biases: same block every grid step

    out = pl.pallas_call(
        _qnet_kernel,
        out_shape=jax.ShapeDtypeStruct((Bp, out_pad), jnp.float32),
        grid=grid,
        in_specs=[
            pl.BlockSpec((bb, rc_pad), lambda i: (i, 0)),        # board (tiled)
            pl.BlockSpec((rc_pad, ngf), resident),               # W1 class 0
            pl.BlockSpec((rc_pad, ngf), resident),               # W1 class 1
            pl.BlockSpec((rc_pad, ngf), resident),               # W1 class 2
            pl.BlockSpec((1, ngf), resident),                    # b1
            pl.BlockSpec((ngf, ngf), resident),                  # W2
            pl.BlockSpec((1, ngf), resident),                    # b2
            pl.BlockSpec((ngf, out_pad), resident),              # W3 (padded)
            pl.BlockSpec((1, out_pad), resident),                # b3 (padded)
            pl.BlockSpec(memory_space=pltpu.MemorySpace.SMEM),   # PReLU alphas
        ],
        out_specs=pl.BlockSpec((bb, out_pad), lambda i: (i, 0)),
        compiler_params=pltpu.CompilerParams(
            dimension_semantics=("parallel",),   # v7x: shard batch over 2 TCs
        ),
        cost_estimate=pl.CostEstimate(
            flops=int(flops), transcendentals=0,
            bytes_accessed=int(bytes_accessed)),
    )(board, w1_0, w1_1, w1_2, b1, w2, b2, w3p, b3p, alphas)

    return out[:B, :actions]


def init_params(key, rc=42, ngf=64, actions=7, rc_pad=None, out_pad=128):
    """PyTorch-default-style init (Linear: U(±1/sqrt(fan_in)), PReLU alpha=0.25).
    Weights are stored (in, out), bf16, pre-split/padded for the kernel layout."""
    if rc_pad is None:
        rc_pad = _round_up(rc, 16)
    in_features = 3 * rc

    def linear(k, fan_in, fan_out):
        kw, kb = jax.random.split(k)
        bound = 1.0 / jnp.sqrt(fan_in)
        w = jax.random.uniform(kw, (fan_in, fan_out), jnp.float32, -bound, bound)
        b = jax.random.uniform(kb, (1, fan_out), jnp.float32, -bound, bound)
        return w, b

    k1, k2, k3 = jax.random.split(key, 3)
    w1, b1 = linear(k1, in_features, ngf)        # (3*rc, ngf)
    w2, b2 = linear(k2, ngf, ngf)
    w3, b3 = linear(k3, ngf, actions)

    # Split W1 into the three per-class row blocks; zero-pad rc -> rc_pad.
    w1c = []
    for c in range(3):
        blk = w1[c * rc:(c + 1) * rc]                           # (rc, ngf)
        blk = jnp.pad(blk, ((0, rc_pad - rc), (0, 0)))
        w1c.append(blk.astype(jnp.bfloat16))

    w2b = w2.astype(jnp.bfloat16)
    w3p = jnp.pad(w3, ((0, 0), (0, out_pad - actions))).astype(jnp.bfloat16)
    b3p = jnp.pad(b3, ((0, 0), (0, out_pad - actions)))
    alphas = jnp.full((2,), 0.25, jnp.float32)   # two independent PReLU alphas

    return (w1c[0], w1c[1], w1c[2], b1, w2b, b2, w3p, b3p, alphas)


if __name__ == "__main__":
    key = jax.random.PRNGKey(0)
    k_x, k_p = jax.random.split(key)

    # Connect-4 style board: (B, 1, 6, 7), values in {0,1,2}; 3*6*7 = 126.
    B, R, C = 2, 6, 7
    actions = 7
    x = jax.random.randint(k_x, (B, 1, R, C), 0, 3, dtype=jnp.int32)

    params = init_params(k_p, rc=R * C, ngf=64, actions=actions)

    out = q_network_forward(x, params, actions=actions)
    out = jax.block_until_ready(out)
    assert out.shape == (B, actions) and out.dtype == jnp.float32

    # Pure-JAX reference (PyTorch semantics) using the same (bf16-rounded)
    # parameter values. Kernel additionally rounds activations to bf16 at the
    # MXU inputs, hence the modest tolerance.
    (w1_0, w1_1, w1_2, b1, w2, b2, w3p, b3p, alphas) = params
    rc = R * C
    W1 = jnp.concatenate([w1_0[:rc], w1_1[:rc], w1_2[:rc]], axis=0).astype(jnp.float32)
    board = x.reshape(B, rc)
    feats = jnp.transpose(jax.nn.one_hot(board, 3, dtype=jnp.float32),
                          (0, 2, 1)).reshape(B, -1)                # channel-major
    h = feats @ W1 + b1
    h = jnp.where(h > 0, h, alphas[0] * h)
    h = h @ w2.astype(jnp.float32) + b2
    h = jnp.where(h > 0, h, alphas[1] * h)
    ref = h @ w3p.astype(jnp.float32)[:, :actions] + b3p[:, :actions]

    assert jnp.allclose(out, ref, atol=2e-2, rtol=2e-2), \
        f"max err {jnp.max(jnp.abs(out - ref))}"

    print("KERNEL_OK")
</pallas_src>

<mosaic_0001>
module attributes {stable_mosaic.version = 11 : i64} {
  func.func @_qnet_kernel(%arg0: i32, %arg1: memref<8x48xi32, #tpu.memory_space<vmem>>, %arg2: memref<48x64xbf16, #tpu.memory_space<vmem>>, %arg3: memref<48x64xbf16, #tpu.memory_space<vmem>>, %arg4: memref<48x64xbf16, #tpu.memory_space<vmem>>, %arg5: memref<1x64xf32, #tpu.memory_space<vmem>>, %arg6: memref<64x64xbf16, #tpu.memory_space<vmem>>, %arg7: memref<1x64xf32, #tpu.memory_space<vmem>>, %arg8: memref<64x128xbf16, #tpu.memory_space<vmem>>, %arg9: memref<1x128xf32, #tpu.memory_space<vmem>>, %arg10: memref<2xf32, #tpu.memory_space<smem>>, %arg11: memref<8x128xf32, #tpu.memory_space<vmem>>) attributes {dimension_semantics = [#tpu.dimension_semantics<parallel>], iteration_bounds = array<i64: 1>, scalar_prefetch = 0 : i64, scratch_operands = 0 : i64, tpu.core_type = #tpu.core_type<tc>, window_params = [{transform_indices = @transform_0, window_bounds = array<i64: 8, 48>}, {pipeline_mode = #tpu.pipeline_mode<synchronous>, transform_indices = @transform_1, window_bounds = array<i64: 48, 64>}, {pipeline_mode = #tpu.pipeline_mode<synchronous>, transform_indices = @transform_2, window_bounds = array<i64: 48, 64>}, {pipeline_mode = #tpu.pipeline_mode<synchronous>, transform_indices = @transform_3, window_bounds = array<i64: 48, 64>}, {pipeline_mode = #tpu.pipeline_mode<synchronous>, transform_indices = @transform_4, window_bounds = array<i64: 1, 64>}, {pipeline_mode = #tpu.pipeline_mode<synchronous>, transform_indices = @transform_5, window_bounds = array<i64: 64, 64>}, {pipeline_mode = #tpu.pipeline_mode<synchronous>, transform_indices = @transform_6, window_bounds = array<i64: 1, 64>}, {pipeline_mode = #tpu.pipeline_mode<synchronous>, transform_indices = @transform_7, window_bounds = array<i64: 64, 128>}, {pipeline_mode = #tpu.pipeline_mode<synchronous>, transform_indices = @transform_8, window_bounds = array<i64: 1, 128>}, {transform_indices = @transform_9, window_bounds = array<i64: 2>}, {transform_indices = @transform_10, window_bounds = array<i64: 8, 128>}]} {
    %c0 = arith.constant 0 : index
    %c0_0 = arith.constant 0 : index
    %0 = vector.load %arg1[%c0, %c0_0] : memref<8x48xi32, #tpu.memory_space<vmem>>, vector<8x48xi32>
    %c0_i32 = arith.constant 0 : i32
    %1 = vector.broadcast %c0_i32 : i32 to vector<8x48xi32>
    %2 = arith.cmpi eq, %0, %1 : vector<8x48xi32>
    %3 = arith.extui %2 : vector<8x48xi1> to vector<8x48xi32>
    %4 = arith.sitofp %3 : vector<8x48xi32> to vector<8x48xf32>
    %5 = arith.truncf %4 : vector<8x48xf32> to vector<8x48xbf16>
    %c1_i32 = arith.constant 1 : i32
    %6 = vector.broadcast %c1_i32 : i32 to vector<8x48xi32>
    %7 = arith.cmpi eq, %0, %6 : vector<8x48xi32>
    %8 = arith.extui %7 : vector<8x48xi1> to vector<8x48xi32>
    %9 = arith.sitofp %8 : vector<8x48xi32> to vector<8x48xf32>
    %10 = arith.truncf %9 : vector<8x48xf32> to vector<8x48xbf16>
    %c2_i32 = arith.constant 2 : i32
    %11 = vector.broadcast %c2_i32 : i32 to vector<8x48xi32>
    %12 = arith.cmpi eq, %0, %11 : vector<8x48xi32>
    %13 = arith.extui %12 : vector<8x48xi1> to vector<8x48xi32>
    %14 = arith.sitofp %13 : vector<8x48xi32> to vector<8x48xf32>
    %15 = arith.truncf %14 : vector<8x48xf32> to vector<8x48xbf16>
    %c0_1 = arith.constant 0 : index
    %c0_2 = arith.constant 0 : index
    %16 = vector.load %arg2[%c0_1, %c0_2] : memref<48x64xbf16, #tpu.memory_space<vmem>>, vector<48x64xbf16>
    %cst = arith.constant dense<0.000000e+00> : vector<8x64xf32>
    %17 = tpu.matmul %5, %16, %cst {dimension_numbers = #tpu.dot_dimension_numbers<[1], [0], [0], [1], [0, 0, 1, 1], [], []>} : vector<8x48xbf16>, vector<48x64xbf16>, vector<8x64xf32> -> vector<8x64xf32>
    %c0_3 = arith.constant 0 : index
    %c0_4 = arith.constant 0 : index
    %18 = vector.load %arg3[%c0_3, %c0_4] : memref<48x64xbf16, #tpu.memory_space<vmem>>, vector<48x64xbf16>
    %cst_5 = arith.constant dense<0.000000e+00> : vector<8x64xf32>
    %19 = tpu.matmul %10, %18, %cst_5 {dimension_numbers = #tpu.dot_dimension_numbers<[1], [0], [0], [1], [0, 0, 1, 1], [], []>} : vector<8x48xbf16>, vector<48x64xbf16>, vector<8x64xf32> -> vector<8x64xf32>
    %20 = arith.addf %17, %19 : vector<8x64xf32>
    %c0_6 = arith.constant 0 : index
    %c0_7 = arith.constant 0 : index
    %21 = vector.load %arg4[%c0_6, %c0_7] : memref<48x64xbf16, #tpu.memory_space<vmem>>, vector<48x64xbf16>
    %cst_8 = arith.constant dense<0.000000e+00> : vector<8x64xf32>
    %22 = tpu.matmul %15, %21, %cst_8 {dimension_numbers = #tpu.dot_dimension_numbers<[1], [0], [0], [1], [0, 0, 1, 1], [], []>} : vector<8x48xbf16>, vector<48x64xbf16>, vector<8x64xf32> -> vector<8x64xf32>
    %23 = arith.addf %20, %22 : vector<8x64xf32>
    %c0_9 = arith.constant 0 : index
    %c0_10 = arith.constant 0 : index
    %24 = vector.load %arg5[%c0_9, %c0_10] : memref<1x64xf32, #tpu.memory_space<vmem>>, vector<1x64xf32>
    %25 = vector.broadcast %24 : vector<1x64xf32> to vector<8x64xf32>
    %26 = arith.addf %23, %25 : vector<8x64xf32>
    %c0_11 = arith.constant 0 : index
    %27 = memref.load %arg10[%c0_11] : memref<2xf32, #tpu.memory_space<smem>>
    %cst_12 = arith.constant 0.000000e+00 : f32
    %28 = vector.broadcast %cst_12 : f32 to vector<8x64xf32>
    %29 = arith.cmpf ogt, %26, %28 : vector<8x64xf32>
    %30 = vector.broadcast %27 : f32 to vector<8x64xf32>
    %31 = arith.mulf %30, %26 : vector<8x64xf32>
    %32 = arith.select %29, %26, %31 : vector<8x64xi1>, vector<8x64xf32>
    %33 = arith.truncf %32 : vector<8x64xf32> to vector<8x64xbf16>
    %c0_13 = arith.constant 0 : index
    %c0_14 = arith.constant 0 : index
    %34 = vector.load %arg6[%c0_13, %c0_14] : memref<64x64xbf16, #tpu.memory_space<vmem>>, vector<64x64xbf16>
    %cst_15 = arith.constant dense<0.000000e+00> : vector<8x64xf32>
    %35 = tpu.matmul %33, %34, %cst_15 {dimension_numbers = #tpu.dot_dimension_numbers<[1], [0], [0], [1], [0, 0, 1, 1], [], []>} : vector<8x64xbf16>, vector<64x64xbf16>, vector<8x64xf32> -> vector<8x64xf32>
    %c0_16 = arith.constant 0 : index
    %c0_17 = arith.constant 0 : index
    %36 = vector.load %arg7[%c0_16, %c0_17] : memref<1x64xf32, #tpu.memory_space<vmem>>, vector<1x64xf32>
    %37 = vector.broadcast %36 : vector<1x64xf32> to vector<8x64xf32>
    %38 = arith.addf %35, %37 : vector<8x64xf32>
    %c1 = arith.constant 1 : index
    %39 = memref.load %arg10[%c1] : memref<2xf32, #tpu.memory_space<smem>>
    %cst_18 = arith.constant 0.000000e+00 : f32
    %40 = vector.broadcast %cst_18 : f32 to vector<8x64xf32>
    %41 = arith.cmpf ogt, %38, %40 : vector<8x64xf32>
    %42 = vector.broadcast %39 : f32 to vector<8x64xf32>
    %43 = arith.mulf %42, %38 : vector<8x64xf32>
    %44 = arith.select %41, %38, %43 : vector<8x64xi1>, vector<8x64xf32>
    %45 = arith.truncf %44 : vector<8x64xf32> to vector<8x64xbf16>
    %c0_19 = arith.constant 0 : index
    %c0_20 = arith.constant 0 : index
    %46 = vector.load %arg8[%c0_19, %c0_20] : memref<64x128xbf16, #tpu.memory_space<vmem>>, vector<64x128xbf16>
    %cst_21 = arith.constant dense<0.000000e+00> : vector<8x128xf32>
    %47 = tpu.matmul %45, %46, %cst_21 {dimension_numbers = #tpu.dot_dimension_numbers<[1], [0], [0], [1], [0, 0, 1, 1], [], []>} : vector<8x64xbf16>, vector<64x128xbf16>, vector<8x128xf32> -> vector<8x128xf32>
    %c0_22 = arith.constant 0 : index
    %c0_23 = arith.constant 0 : index
    %48 = vector.load %arg9[%c0_22, %c0_23] : memref<1x128xf32, #tpu.memory_space<vmem>>, vector<1x128xf32>
    %49 = vector.broadcast %48 : vector<1x128xf32> to vector<8x128xf32>
    %50 = arith.addf %47, %49 : vector<8x128xf32>
    %c0_24 = arith.constant 0 : index
    %c0_25 = arith.constant 0 : index
    %51 = vector.load %arg11[%c0_24, %c0_25] : memref<8x128xf32, #tpu.memory_space<vmem>>, vector<8x128xf32>
    tpu.vector_store %arg11[%c0_24, %c0_25], %50 {strides = array<i32>} : memref<8x128xf32, #tpu.memory_space<vmem>>, vector<8x128xf32>,
    return
  }
  func.func @transform_0(%arg0: i32) -> (i32, i32) {
    %c0_i32 = arith.constant 0 : i32
    %c0_i32_0 = arith.constant 0 : i32
    return %arg0, %c0_i32 : i32, i32
  }
  func.func @transform_1(%arg0: i32) -> (i32, i32) {
    %c0_i32 = arith.constant 0 : i32
    %c0_i32_0 = arith.constant 0 : i32
    %c0_i32_1 = arith.constant 0 : i32
    return %c0_i32, %c0_i32_0 : i32, i32
  }
  func.func @transform_2(%arg0: i32) -> (i32, i32) {
    %c0_i32 = arith.constant 0 : i32
    %c0_i32_0 = arith.constant 0 : i32
    %c0_i32_1 = arith.constant 0 : i32
    return %c0_i32, %c0_i32_0 : i32, i32
  }
  func.func @transform_3(%arg0: i32) -> (i32, i32) {
    %c0_i32 = arith.constant 0 : i32
    %c0_i32_0 = arith.constant 0 : i32
    %c0_i32_1 = arith.constant 0 : i32
    return %c0_i32, %c0_i32_0 : i32, i32
  }
  func.func @transform_4(%arg0: i32) -> (i32, i32) {
    %c0_i32 = arith.constant 0 : i32
    %c0_i32_0 = arith.constant 0 : i32
    %c0_i32_1 = arith.constant 0 : i32
    return %c0_i32, %c0_i32_0 : i32, i32
  }
  func.func @transform_5(%arg0: i32) -> (i32, i32) {
    %c0_i32 = arith.constant 0 : i32
    %c0_i32_0 = arith.constant 0 : i32
    %c0_i32_1 = arith.constant 0 : i32
    return %c0_i32, %c0_i32_0 : i32, i32
  }
  func.func @transform_6(%arg0: i32) -> (i32, i32) {
    %c0_i32 = arith.constant 0 : i32
    %c0_i32_0 = arith.constant 0 : i32
    %c0_i32_1 = arith.constant 0 : i32
    return %c0_i32, %c0_i32_0 : i32, i32
  }
  func.func @transform_7(%arg0: i32) -> (i32, i32) {
    %c0_i32 = arith.constant 0 : i32
    %c0_i32_0 = arith.constant 0 : i32
    %c0_i32_1 = arith.constant 0 : i32
    return %c0_i32, %c0_i32_0 : i32, i32
  }
  func.func @transform_8(%arg0: i32) -> (i32, i32) {
    %c0_i32 = arith.constant 0 : i32
    %c0_i32_0 = arith.constant 0 : i32
    %c0_i32_1 = arith.constant 0 : i32
    return %c0_i32, %c0_i32_0 : i32, i32
  }
  func.func @transform_9(%arg0: i32) -> i32 {
    %c0_i32 = arith.constant 0 : i32
    %c0_i32_0 = arith.constant 0 : i32
    return %c0_i32 : i32
  }
  func.func @transform_10(%arg0: i32) -> (i32, i32) {
    %c0_i32 = arith.constant 0 : i32
    %c0_i32_0 = arith.constant 0 : i32
    return %arg0, %c0_i32 : i32, i32
  }
}

</mosaic_0001>

<llo_original>
// kernel: tpu_custom_call.1
$region0: #{tpu_custom_call.1}
  #allocation0 [shape = 'u32[]', space=smem, size = 0x4, offset = 0x4, fixed_abs, tag = 'smem constant byte address 0x4 - core index']
  #allocation1 [shape = 'u32[72,128]{1,0:T(1,128)}', space=vmem, size = 0x9000, scoped, tag = 'internal scratch']
  %s0 = inlined_call_operand.hbm [shape: s32[8,48], index: 0, kind: input, shape index: {}]
  %s1 = inlined_call_operand.hbm [shape: bf16[48,64], index: 1, kind: input, shape index: {}]
  %s2 = inlined_call_operand.hbm [shape: bf16[48,64], index: 2, kind: input, shape index: {}]
  %s3 = inlined_call_operand.hbm [shape: bf16[48,64], index: 3, kind: input, shape index: {}]
  %s4 = inlined_call_operand.vmem [shape: f32[1,64], index: 4, kind: input, shape index: {}]
  %s5 = inlined_call_operand.hbm [shape: bf16[64,64], index: 5, kind: input, shape index: {}]
  %s6 = inlined_call_operand.vmem [shape: f32[1,64], index: 6, kind: input, shape index: {}]
  %s7 = inlined_call_operand.hbm [shape: bf16[64,128], index: 7, kind: input, shape index: {}]
  %s8 = inlined_call_operand.vmem [shape: f32[1,128], index: 8, kind: input, shape index: {}]
  %s9 = inlined_call_operand.vmem [shape: f32[2], index: 9, kind: input, shape index: {}]
  %s10 = inlined_call_operand.hbm [shape: f32[8,128], index: 10, kind: output, shape index: {}]
  %s11 = sld [smem:[#allocation0]]
  $region78: #{tpu_custom_call.1} parent=0
    _
  %s13 = ssub.s32 1, %s11
  %s14 = scalar_select 0, %s13, %s11
  $region1: #{tpu_custom_call.1} parent=0
    #allocation2 [shape = 'u8[4096]{0}', space=vmem, size = 0x1000, scoped, tag = 'input window, operand 0, single buffered']
    #allocation3 [shape = 's32[1]{0}', space=sflag, size = 0x4, scoped, tag = 'scoped memory for tpu_custom_call.1']
    #allocation4 [shape = 's32[1]{0}', space=sflag, size = 0x4, scoped, tag = 'scoped memory for tpu_custom_call.1']
    #allocation5 [shape = 's32[1]{0}', space=sflag, size = 0x4, scoped, tag = 'scoped memory for tpu_custom_call.1']
    #allocation6 [shape = 'u8[12288]{0}', space=vmem, size = 0x3000, scoped, tag = 'input window, operand 1, single buffered']
    #allocation7 [shape = 's32[1]{0}', space=sflag, size = 0x4, scoped, tag = 'scoped memory for tpu_custom_call.1']
    #allocation8 [shape = 'u8[12288]{0}', space=vmem, size = 0x3000, scoped, tag = 'input window, operand 2, single buffered']
    #allocation9 [shape = 'u8[12288]{0}', space=vmem, size = 0x3000, scoped, tag = 'input window, operand 3, single buffered']
    #allocation10 [shape = 's32[1]{0}', space=sflag, size = 0x4, scoped, tag = 'scoped memory for tpu_custom_call.1']
    #allocation11 [shape = 'u8[16384]{0}', space=vmem, size = 0x4000, scoped, tag = 'input window, operand 5, single buffered']
    #allocation12 [shape = 'u8[16384]{0}', space=vmem, size = 0x4000, scoped, tag = 'input window, operand 7, single buffered']
    #allocation13 [shape = 's32[1]{0}', space=sflag, size = 0x4, scoped, tag = 'scoped memory for tpu_custom_call.1']
    #allocation14 [shape = 'u8[512]{0}', space=smem, size = 0x200, scoped, tag = 'input window, operand 9, single buffered']
    #allocation15 [shape = 'u8[4096]{0}', space=vmem, size = 0x1000, scoped, tag = 'output window, operand 0, single buffered']
    %15 = vsyncpa [#allocation3], 0
    %16 = vsyncpa [#allocation7], 0
    %17 = vsyncpa [#allocation10], 0
    %18 = vsyncpa [#allocation13], 0
    %19 = vsyncpa [#allocation5], 0
    %20 = vsyncpa [#allocation4], 0
    // Predicated region
    $region2: #{tpu_custom_call.1} parent=1 // pred_check
      _
    $region3: #{tpu_custom_call.1} parent=1 // pred_check_branch
      %22 = sbr.rel (0) target = $region5
    $region4: #{tpu_custom_call.1} parent=1 // pred_region
      %24 = vsyncadd [#allocation3], 0
      %s26 = sshll.u32 %s0, 4
      %s27 = int_to_ptr.hbm [resolvable:$true] %s26
      %s28 = sshll.u32 [#allocation2], 4
      %s29 = int_to_ptr.vmem [resolvable:$true] %s28
      %31 = dma.hbm_to_vmem [thread:$0]  %s27, 128, %s29, [#allocation3]
    $region5: #{tpu_custom_call.1} parent=1 // pred_fallthru
      _
    // Predicated region
    $region6: #{tpu_custom_call.1} parent=1 // pred_check
      _
    $region7: #{tpu_custom_call.1} parent=1 // pred_check_branch
      %33 = sbr.rel (0) target = $region9
    $region8: #{tpu_custom_call.1} parent=1 // pred_region
      %35 = vsyncadd [#allocation7], 0
      %s36 = sshll.u32 %s1, 4
      %s37 = int_to_ptr.hbm [resolvable:$true] %s36
      %s38 = sshll.u32 [#allocation6], 4
      %s39 = int_to_ptr.vmem [resolvable:$true] %s38
      %44 = dma.hbm_to_vmem [thread:$0]  %s37, 384, %s39, [#allocation7], 64, 64, 4
    $region9: #{tpu_custom_call.1} parent=1 // pred_fallthru
      _
    // Predicated region
    $region10: #{tpu_custom_call.1} parent=1 // pred_check
      _
    $region11: #{tpu_custom_call.1} parent=1 // pred_check_branch
      %46 = sbr.rel (0) target = $region13
    $region12: #{tpu_custom_call.1} parent=1 // pred_region
      %48 = vsyncadd [#allocation7], 0
      %s49 = sshll.u32 %s2, 4
      %s50 = int_to_ptr.hbm [resolvable:$true] %s49
      %s51 = sshll.u32 [#allocation8], 4
      %s52 = int_to_ptr.vmem [resolvable:$true] %s51
      %57 = dma.hbm_to_vmem [thread:$0]  %s50, 384, %s52, [#allocation7], 64, 64, 4
    $region13: #{tpu_custom_call.1} parent=1 // pred_fallthru
      _
    // Predicated region
    $region14: #{tpu_custom_call.1} parent=1 // pred_check
      _
    $region15: #{tpu_custom_call.1} parent=1 // pred_check_branch
      %59 = sbr.rel (0) target = $region17
    $region16: #{tpu_custom_call.1} parent=1 // pred_region
      %61 = vsyncadd [#allocation10], 0
      %s62 = sshll.u32 %s3, 4
      %s63 = int_to_ptr.hbm [resolvable:$true] %s62
      %s64 = sshll.u32 [#allocation9], 4
      %s65 = int_to_ptr.vmem [resolvable:$true] %s64
      %70 = dma.hbm_to_vmem [thread:$0]  %s63, 384, %s65, [#allocation10], 64, 64, 4
    $region17: #{tpu_custom_call.1} parent=1 // pred_fallthru
      _
    // Predicated region
    $region18: #{tpu_custom_call.1} parent=1 // pred_check
      _
    $region19: #{tpu_custom_call.1} parent=1 // pred_check_branch
      %72 = sbr.rel (0) target = $region21
    $region20: #{tpu_custom_call.1} parent=1 // pred_region
      _
    $region21: #{tpu_custom_call.1} parent=1 // pred_fallthru
      _
    // Predicated region
    $region22: #{tpu_custom_call.1} parent=1 // pred_check
      _
    $region23: #{tpu_custom_call.1} parent=1 // pred_check_branch
      %74 = sbr.rel (0) target = $region25
    $region24: #{tpu_custom_call.1} parent=1 // pred_region
      %76 = vsyncadd [#allocation10], 0
      %s77 = sshll.u32 %s5, 4
      %s78 = int_to_ptr.hbm [resolvable:$true] %s77
      %s79 = sshll.u32 [#allocation11], 4
      %s80 = int_to_ptr.vmem [resolvable:$true] %s79
      %85 = dma.hbm_to_vmem [thread:$0]  %s78, 512, %s80, [#allocation10], 64, 64, 4
    $region25: #{tpu_custom_call.1} parent=1 // pred_fallthru
      _
    // Predicated region
    $region26: #{tpu_custom_call.1} parent=1 // pred_check
      _
    $region27: #{tpu_custom_call.1} parent=1 // pred_check_branch
      %87 = sbr.rel (0) target = $region29
    $region28: #{tpu_custom_call.1} parent=1 // pred_region
      _
    $region29: #{tpu_custom_call.1} parent=1 // pred_fallthru
      _
    // Predicated region
    $region30: #{tpu_custom_call.1} parent=1 // pred_check
      _
    $region31: #{tpu_custom_call.1} parent=1 // pred_check_branch
      %89 = sbr.rel (0) target = $region33
    $region32: #{tpu_custom_call.1} parent=1 // pred_region
      %91 = vsyncadd [#allocation13], 0
      %s92 = sshll.u32 %s7, 4
      %s93 = int_to_ptr.hbm [resolvable:$true] %s92
      %s94 = sshll.u32 [#allocation12], 4
      %s95 = int_to_ptr.vmem [resolvable:$true] %s94
      %100 = dma.hbm_to_vmem [thread:$0]  %s93, 512, %s95, [#allocation13], 64, 64, 4
    $region33: #{tpu_custom_call.1} parent=1 // pred_fallthru
      _
    // Predicated region
    $region34: #{tpu_custom_call.1} parent=1 // pred_check
      _
    $region35: #{tpu_custom_call.1} parent=1 // pred_check_branch
      %102 = sbr.rel (0) target = $region37
    $region36: #{tpu_custom_call.1} parent=1 // pred_region
      _
    $region37: #{tpu_custom_call.1} parent=1 // pred_fallthru
      _
    // Predicated region
    $region38: #{tpu_custom_call.1} parent=1 // pred_check
      _
    $region39: #{tpu_custom_call.1} parent=1 // pred_check_branch
      %104 = sbr.rel (0) target = $region41
    $region40: #{tpu_custom_call.1} parent=1 // pred_region
      %106 = vsyncadd [#allocation5], 0
      %s108 = sshll.u32 %s9, 4
      %s109 = int_to_ptr.vmem [resolvable:$true] %s108
      %111 = dma.vmem_to_smem %s109, 16, [#allocation14], [#allocation5]
    $region41: #{tpu_custom_call.1} parent=1 // pred_fallthru
      _
    // Predicated region
    $region42: #{tpu_custom_call.1} parent=1 // pred_check
      _
    $region43: #{tpu_custom_call.1} parent=1 // pred_check_branch
      %113 = sbr.rel (0) target = $region45
    $region44: #{tpu_custom_call.1} parent=1 // pred_region
      %115 = dma.done [#allocation3], 128
    $region45: #{tpu_custom_call.1} parent=1 // pred_fallthru
      _
    // Predicated region
    $region46: #{tpu_custom_call.1} parent=1 // pred_check
      _
    $region47: #{tpu_custom_call.1} parent=1 // pred_check_branch
      %117 = sbr.rel (0) target = $region49
    $region48: #{tpu_custom_call.1} parent=1 // pred_region
      %119 = dma.done [#allocation7], 384
    $region49: #{tpu_custom_call.1} parent=1 // pred_fallthru
      _
    // Predicated region
    $region50: #{tpu_custom_call.1} parent=1 // pred_check
      _
    $region51: #{tpu_custom_call.1} parent=1 // pred_check_branch
      %121 = sbr.rel (0) target = $region53
    $region52: #{tpu_custom_call.1} parent=1 // pred_region
      %123 = dma.done [#allocation7], 384
    $region53: #{tpu_custom_call.1} parent=1 // pred_fallthru
      _
    // Predicated region
    $region54: #{tpu_custom_call.1} parent=1 // pred_check
      _
    $region55: #{tpu_custom_call.1} parent=1 // pred_check_branch
      %125 = sbr.rel (0) target = $region57
    $region56: #{tpu_custom_call.1} parent=1 // pred_region
      %127 = dma.done [#allocation10], 384
    $region57: #{tpu_custom_call.1} parent=1 // pred_fallthru
      _
    // Predicated region
    $region58: #{tpu_custom_call.1} parent=1 // pred_check
      _
    $region59: #{tpu_custom_call.1} parent=1 // pred_check_branch
      %129 = sbr.rel (0) target = $region61
    $region60: #{tpu_custom_call.1} parent=1 // pred_region
      %131 = dma.done [#allocation10], 512
    $region61: #{tpu_custom_call.1} parent=1 // pred_fallthru
      _
    // Predicated region
    $region62: #{tpu_custom_call.1} parent=1 // pred_check
      _
    $region63: #{tpu_custom_call.1} parent=1 // pred_check_branch
      %133 = sbr.rel (0) target = $region65
    $region64: #{tpu_custom_call.1} parent=1 // pred_region
      %135 = dma.done [#allocation13], 512
    $region65: #{tpu_custom_call.1} parent=1 // pred_fallthru
      _
    // Predicated region
    $region66: #{tpu_custom_call.1} parent=1 // pred_check
      _
    $region67: #{tpu_custom_call.1} parent=1 // pred_check_branch
      %137 = sbr.rel (0) target = $region69
    $region68: #{tpu_custom_call.1} parent=1 // pred_region
      %139 = dma.done [#allocation5], 16
    $region69: #{tpu_custom_call.1} parent=1 // pred_fallthru
      _
    %140 = sfence
    %v142 = vld [vmem:[#allocation2] sm:$0xff]
    %vm143 = vcmp.eq.s32.totalorder %v142, 0
    %v144 = vsel %vm143, 1, 0
    %v145 = vcvt.s32.f32 %v144
    %v146 = vpack.c.bf16 %v145, %v145
    %vm147 = vcmp.eq.s32.totalorder %v142, 1
    %v148 = vsel %vm147, 1, 0
    %v149 = vcvt.s32.f32 %v148
    %v150 = vpack.c.bf16 %v149, %v149
    %vm151 = vcmp.eq.s32.totalorder %v142, 2
    %v152 = vsel %vm151, 1, 0
    %v153 = vcvt.s32.f32 %v152
    %v154 = vpack.c.bf16 %v153, %v153
    %v155 = vld [vmem:[#allocation6] sm:$0xf]
    %v156 = vld [vmem:[#allocation6 + $0x4] sm:$0xf]
    %v157 = vld [vmem:[#allocation6 + $0x8] sm:$0xf]
    %v158 = vld [vmem:[#allocation6 + $0xc] sm:$0xf]
    %v159 = vld [vmem:[#allocation6 + $0x10] sm:$0xf]
    %v160 = vld [vmem:[#allocation6 + $0x14] sm:$0xf]
    %v161 = vld [vmem:[#allocation8] sm:$0xf]
    %v162 = vld [vmem:[#allocation8 + $0x4] sm:$0xf]
    %v163 = vld [vmem:[#allocation8 + $0x8] sm:$0xf]
    %v164 = vld [vmem:[#allocation8 + $0xc] sm:$0xf]
    %v165 = vld [vmem:[#allocation8 + $0x10] sm:$0xf]
    %v166 = vld [vmem:[#allocation8 + $0x14] sm:$0xf]
    %v173 = vunpack.c.l.b16 %v161
    %v174 = vunpack.c.l.b16 %v162
    %v175 = vunpack.c.l.b16 %v163
    %v176 = vunpack.c.l.b16 %v164
    %v177 = vunpack.c.l.b16 %v165
    %v178 = vunpack.c.l.b16 %v166
    %v179 = vpack.c.b16 %v174, %v173
    %v180 = vpack.c.b16 %v176, %v175
    %v181 = vpack.c.b16 %v178, %v177
    %vm185 = vcmask 392192
    %v187 = vsel %vm185, %v150, 0
    %189 = vmatpush.bf16.msra.mxu0 0
    %190 = vmatpush.bf16.msra.mxu0 0
    %191 = vmatpush.bf16.msra.mxu0 0
    %192 = vmatpush.bf16.msra.mxu0 0
    %193 = vmatpush.bf16.msra.mxu0 0
    %194 = vmatpush.bf16.msra.mxu0 %v181
    %195 = vmatpush.bf16.msra.mxu0 %v180
    %196 = vmatpush.bf16.msra.mxu0 %v179
    %197 = vmatmul.bf16.gmra.mxu0 %v187
    %v198 = vpop.f32.mrf.mxu0
    %v199 = vadd.f32 0.0, %v198
    %v200 = vpop.f32.mrf.mxu0
    %201 = vdwg.mxu0
    %v208 = vunpack.c.l.b16 %v155
    %v209 = vunpack.c.l.b16 %v156
    %v210 = vunpack.c.l.b16 %v157
    %v211 = vunpack.c.l.b16 %v158
    %v212 = vunpack.c.l.b16 %v159
    %v213 = vunpack.c.l.b16 %v160
    %v214 = vpack.c.b16 %v209, %v208
    %v215 = vpack.c.b16 %v211, %v210
    %v216 = vpack.c.b16 %v213, %v212
    %v221 = vsel %vm185, %v146, 0
    %223 = vmatpush.bf16.msra.mxu0 0
    %224 = vmatpush.bf16.msra.mxu0 0
    %225 = vmatpush.bf16.msra.mxu0 0
    %226 = vmatpush.bf16.msra.mxu0 0
    %227 = vmatpush.bf16.msra.mxu0 0
    %228 = vmatpush.bf16.msra.mxu0 %v216
    %229 = vmatpush.bf16.msra.mxu0 %v215
    %230 = vmatpush.bf16.msra.mxu0 %v214
    %231 = vmatmul.bf16.gmra.mxu0 %v221
    %v232 = vpop.f32.mrf.mxu0
    %v233 = vadd.f32 %v199, %v232
    %v234 = vpop.f32.mrf.mxu0
    %235 = vdwg.mxu0
    %v236 = vld [vmem:[#allocation9] sm:$0xf]
    %v237 = vld [vmem:[#allocation9 + $0x4] sm:$0xf]
    %v238 = vld [vmem:[#allocation9 + $0x8] sm:$0xf]
    %v239 = vld [vmem:[#allocation9 + $0xc] sm:$0xf]
    %v240 = vld [vmem:[#allocation9 + $0x10] sm:$0xf]
    %v241 = vld [vmem:[#allocation9 + $0x14] sm:$0xf]
    %v248 = vunpack.c.l.b16 %v236
    %v249 = vunpack.c.l.b16 %v237
    %v250 = vunpack.c.l.b16 %v238
    %v251 = vunpack.c.l.b16 %v239
    %v252 = vunpack.c.l.b16 %v240
    %v253 = vunpack.c.l.b16 %v241
    %v254 = vpack.c.b16 %v249, %v248
    %v255 = vpack.c.b16 %v251, %v250
    %v256 = vpack.c.b16 %v253, %v252
    %v261 = vsel %vm185, %v154, 0
    %263 = vmatpush.bf16.msra.mxu0 0
    %264 = vmatpush.bf16.msra.mxu0 0
    %265 = vmatpush.bf16.msra.mxu0 0
    %266 = vmatpush.bf16.msra.mxu0 0
    %267 = vmatpush.bf16.msra.mxu0 0
    %268 = vmatpush.bf16.msra.mxu0 %v256
    %269 = vmatpush.bf16.msra.mxu0 %v255
    %270 = vmatpush.bf16.msra.mxu0 %v254
    %271 = vmatmul.bf16.gmra.mxu0 %v261
    %v272 = vpop.f32.mrf.mxu0
    %v273 = vadd.f32 0.0, %v272
    %v274 = vpop.f32.mrf.mxu0
    %275 = vdwg.mxu0
    %v276 = vadd.f32 %v233, %v273
    %v277 = vld [vmem:[%s4] sm:$0x1]
    %v279 = vperm.slane %v277, 0
    %v281 = vadd.f32 %v276, %v279
    %s282 = sld [smem:[#allocation14]]
    %vm283 = vcmp.gt.f32.partialorder %v281, 0.0
    %v284 = vstv %s282
    %v285 = vmul.f32 %v284, %v281
    %v286 = vsel %vm283, %v281, %v285
    %v287 = vpack.c.bf16 %v286, %v286
    %v288 = vld [vmem:[#allocation11] sm:$0xf]
    %v289 = vld [vmem:[#allocation11 + $0x4] sm:$0xf]
    %v290 = vld [vmem:[#allocation11 + $0x8] sm:$0xf]
    %v291 = vld [vmem:[#allocation11 + $0xc] sm:$0xf]
    %v292 = vld [vmem:[#allocation11 + $0x10] sm:$0xf]
    %v293 = vld [vmem:[#allocation11 + $0x14] sm:$0xf]
    %v294 = vld [vmem:[#allocation11 + $0x18] sm:$0xf]
    %v295 = vld [vmem:[#allocation11 + $0x1c] sm:$0xf]
    %v296 = vld [vmem:[%s6] sm:$0x1]
    %v298 = vperm.slane %v296, 0
    %v308 = vunpack.c.l.b16 %v288
    %v309 = vunpack.c.l.b16 %v289
    %v310 = vunpack.c.l.b16 %v290
    %v311 = vunpack.c.l.b16 %v291
    %v312 = vunpack.c.l.b16 %v292
    %v313 = vunpack.c.l.b16 %v293
    %v314 = vunpack.c.l.b16 %v294
    %v315 = vunpack.c.l.b16 %v295
    %v316 = vpack.c.b16 %v309, %v308
    %v317 = vpack.c.b16 %v311, %v310
    %v318 = vpack.c.b16 %v313, %v312
    %v319 = vpack.c.b16 %v315, %v314
    %vm324 = vcmask 523264
    %v326 = vsel %vm324, %v287, 0
    %328 = vmatpush.bf16.msra.mxu0 0
    %329 = vmatpush.bf16.msra.mxu0 0
    %330 = vmatpush.bf16.msra.mxu0 0
    %331 = vmatpush.bf16.msra.mxu0 0
    %332 = vmatpush.bf16.msra.mxu0 %v319
    %333 = vmatpush.bf16.msra.mxu0 %v318
    %334 = vmatpush.bf16.msra.mxu0 %v317
    %335 = vmatpush.bf16.msra.mxu0 %v316
    %336 = vmatmul.bf16.gmra.mxu0 %v326
    %v337 = vpop.f32.mrf.mxu0
    %v338 = vadd.f32 %v298, %v337
    %v339 = vpop.f32.mrf.mxu0
    %340 = vdwg.mxu0
    %s341 = sld [smem:[#allocation14 + $0x1]]
    %vm342 = vcmp.gt.f32.partialorder %v338, 0.0
    %v343 = vstv %s341
    %v344 = vmul.f32 %v343, %v338
    %v345 = vsel %vm342, %v338, %v344
    %v346 = vpack.c.bf16 %v345, %v345
    %v347 = vld [vmem:[#allocation12] sm:$0xf]
    %v348 = vld [vmem:[#allocation12 + $0x4] sm:$0xf]
    %v349 = vld [vmem:[#allocation12 + $0x8] sm:$0xf]
    %v350 = vld [vmem:[#allocation12 + $0xc] sm:$0xf]
    %v351 = vld [vmem:[#allocation12 + $0x10] sm:$0xf]
    %v352 = vld [vmem:[#allocation12 + $0x14] sm:$0xf]
    %v353 = vld [vmem:[#allocation12 + $0x18] sm:$0xf]
    %v354 = vld [vmem:[#allocation12 + $0x1c] sm:$0xf]
    %v355 = vld [vmem:[%s8] sm:$0x1]
    %v357 = vperm.slane %v355, 0
    %v367 = vunpack.c.l.b16 %v347
    %v368 = vunpack.c.l.b16 %v348
    %v369 = vunpack.c.l.b16 %v349
    %v370 = vunpack.c.l.b16 %v350
    %v371 = vunpack.c.l.b16 %v351
    %v372 = vunpack.c.l.b16 %v352
    %v373 = vunpack.c.l.b16 %v353
    %v374 = vunpack.c.l.b16 %v354
    %v375 = vpack.c.b16 %v368, %v367
    %v376 = vpack.c.b16 %v370, %v369
    %v377 = vpack.c.b16 %v372, %v371
    %v378 = vpack.c.b16 %v374, %v373
    %v384 = vsel %vm324, %v346, 0
    %386 = vmatpush.bf16.msra.mxu0 0
    %387 = vmatpush.bf16.msra.mxu0 0
    %388 = vmatpush.bf16.msra.mxu0 0
    %389 = vmatpush.bf16.msra.mxu0 0
    %390 = vmatpush.bf16.msra.mxu0 %v378
    %391 = vmatpush.bf16.msra.mxu0 %v377
    %392 = vmatpush.bf16.msra.mxu0 %v376
    %393 = vmatpush.bf16.msra.mxu0 %v375
    %394 = vmatmul.bf16.gmra.mxu0 %v384
    %v395 = vpop.f32.mrf.mxu0
    %v396 = vadd.f32 %v357, %v395
    %v397 = vpop.f32.mrf.mxu0
    %398 = vdwg.mxu0
    %399 = vst [vmem:[#allocation15] sm:$0xff] %v396
    // Predicated region
    $region70: #{tpu_custom_call.1} parent=1 // pred_check
      _
    $region71: #{tpu_custom_call.1} parent=1 // pred_check_branch
      %401 = sbr.rel (0) target = $region73
    $region72: #{tpu_custom_call.1} parent=1 // pred_region
      %403 = vsyncadd [#allocation4], 0
      %s405 = sshll.u32 [#allocation15], 4
      %s406 = int_to_ptr.vmem [resolvable:$true] %s405
      %s407 = sshll.u32 %s10, 4
      %s408 = int_to_ptr.hbm [resolvable:$true] %s407
      %410 = dma.vmem_to_hbm [thread:$0]  %s406, 128, %s408, [#allocation4]
    $region73: #{tpu_custom_call.1} parent=1 // pred_fallthru
      _
    // Predicated region
    $region74: #{tpu_custom_call.1} parent=1 // pred_check
      _
    $region75: #{tpu_custom_call.1} parent=1 // pred_check_branch
      %412 = sbr.rel (0) target = $region77
    $region76: #{tpu_custom_call.1} parent=1 // pred_region
      %414 = dma.done [#allocation4], 128
    $region77: #{tpu_custom_call.1} parent=1 // pred_fallthru
      _
    %415 = vsyncpa [#allocation3], 1
    %416 = vsyncpa [#allocation7], 1
    %417 = vsyncpa [#allocation10], 1
    %418 = vsyncpa [#allocation13], 1
    %419 = vsyncpa [#allocation4], 1
    %420 = vsyncpa [#allocation5], 1

</llo_original>
